<compile_context>
chip_gen: v7x
topology: tpu7x:2x2x1
jax: 0.10.0
libtpu: 0.0.40
codegen_flags: <defaults>
</compile_context>

<pallas_src>
import jax
import jax.numpy as jnp
from jax import lax
from jax.experimental import pallas as pl
from jax.experimental.pallas import tpu as pltpu

_LANE = 1024          # lane-dense last dim (multiple of 128)
_MAX_BLOCK_ROWS = 256 # 256 * 1024 * 4B = 1 MiB per block buffer


def _round_up(a, b):
    return (a + b - 1) // b * b


def _stochastic_binary_kernel(seed_ref, slope_ref, x_ref, o_ref):
    tm, lane = x_ref.shape
    pid = pl.program_id(0)

    slope = slope_ref[0]
    z = slope * x_ref[...]                      # compare target in [-inf, inf]

    # ---- counter-based PRNG: unique global element index, hashed ----------
    row = lax.broadcasted_iota(jnp.int32, (tm, lane), 0)
    col = lax.broadcasted_iota(jnp.int32, (tm, lane), 1)
    gid = (pid * tm + row) * lane + col         # global element counter

    h = gid.astype(jnp.uint32) ^ seed_ref[0].astype(jnp.uint32)
    # murmur3 fmix32 finalizer (good avalanche, cheap VPU int ops)
    h = h ^ (h >> jnp.uint32(16))
    h = h * jnp.uint32(0x85EBCA6B)
    h = h ^ (h >> jnp.uint32(13))
    h = h * jnp.uint32(0xC2B2AE35)
    h = h ^ (h >> jnp.uint32(16))

    # top 24 bits -> uniform u2 in [-1, 1)
    top = (h >> jnp.uint32(8)).astype(jnp.int32)          # [0, 2^24)
    u2 = top.astype(jnp.float32) * jnp.float32(1.0 / (1 << 23)) - 1.0

    # Bernoulli(hard_sigmoid(z)) == (u2 < z) for u2 ~ U[-1, 1)
    o_ref[...] = (u2 < z).astype(o_ref.dtype)


def stochastic_binary_activation(x, slope, seed=0):
    """x: f32 [N, C, H, W] (any shape works); slope: scalar; returns f32 like x."""
    orig_shape = x.shape
    total = x.size

    # Lane-dense 2-D slab, row-tiled.
    rows_needed = max(1, -(-total // _LANE))
    tm = min(_MAX_BLOCK_ROWS, _round_up(rows_needed, 8))
    rows = _round_up(rows_needed, tm)
    padded = rows * _LANE

    x_flat = x.reshape(-1).astype(jnp.float32)
    if padded != total:
        x_flat = jnp.pad(x_flat, (0, padded - total))
    x2d = x_flat.reshape(rows, _LANE)

    seed_arr = jnp.asarray([seed], dtype=jnp.int32)
    slope_arr = jnp.asarray([slope], dtype=jnp.float32)

    out2d = pl.pallas_call(
        _stochastic_binary_kernel,
        out_shape=jax.ShapeDtypeStruct((rows, _LANE), jnp.float32),
        grid=(rows // tm,),
        in_specs=[
            pl.BlockSpec(memory_space=pltpu.SMEM),            # seed
            pl.BlockSpec(memory_space=pltpu.SMEM),            # slope
            pl.BlockSpec((tm, _LANE), lambda i: (i, 0)),       # x tile
        ],
        out_specs=pl.BlockSpec((tm, _LANE), lambda i: (i, 0)),
        compiler_params=pltpu.CompilerParams(
            dimension_semantics=("parallel",),                 # megacore-shardable
        ),
    )(seed_arr, slope_arr, x2d)

    return out2d.reshape(-1)[:total].reshape(orig_shape)


if __name__ == "__main__":
    key = jax.random.PRNGKey(0)
    x = jax.random.normal(key, (2, 4, 16, 16), dtype=jnp.float32)
    slope = 1.0

    out = stochastic_binary_activation(x, slope, seed=0)
    out = jax.block_until_ready(out)

    # Shape preserved, output strictly {0, 1}.
    assert out.shape == x.shape
    assert bool(jnp.all((out == 0.0) | (out == 1.0)))
    # Saturated probabilities are deterministic.
    z = slope * x
    assert bool(jnp.all(out[z >= 1.0] == 1.0))
    assert bool(jnp.all(out[z <= -1.0] == 0.0))

    print("KERNEL_OK")
</pallas_src>

<mosaic_0001>
module attributes {stable_mosaic.version = 11 : i64} {
  func.func @_stochastic_binary_kernel(%arg0: i32, %arg1: memref<1xi32, #tpu.memory_space<smem>>, %arg2: memref<1xf32, #tpu.memory_space<smem>>, %arg3: memref<8x1024xf32, #tpu.memory_space<vmem>>, %arg4: memref<8x1024xf32, #tpu.memory_space<vmem>>) attributes {dimension_semantics = [#tpu.dimension_semantics<parallel>], iteration_bounds = array<i64: 1>, scalar_prefetch = 0 : i64, scratch_operands = 0 : i64, tpu.core_type = #tpu.core_type<tc>, window_params = [{transform_indices = @transform_0, window_bounds = array<i64: 1>}, {transform_indices = @transform_1, window_bounds = array<i64: 1>}, {transform_indices = @transform_2, window_bounds = array<i64: 8, 1024>}, {transform_indices = @transform_3, window_bounds = array<i64: 8, 1024>}]} {
    %c0 = arith.constant 0 : index
    %0 = memref.load %arg2[%c0] : memref<1xf32, #tpu.memory_space<smem>>
    %c0_0 = arith.constant 0 : index
    %c0_1 = arith.constant 0 : index
    %1 = vector.load %arg3[%c0_0, %c0_1] : memref<8x1024xf32, #tpu.memory_space<vmem>>, vector<8x1024xf32>
    %2 = vector.broadcast %0 : f32 to vector<8x1024xf32>
    %3 = arith.mulf %2, %1 : vector<8x1024xf32>
    %4 = tpu.iota {dimensions = array<i32: 0>} : vector<8x1024xi32>
    %5 = tpu.iota {dimensions = array<i32: 1>} : vector<8x1024xi32>
    %c8_i32 = arith.constant 8 : i32
    %6 = arith.muli %arg0, %c8_i32 : i32
    %7 = vector.broadcast %6 : i32 to vector<8x1024xi32>
    %8 = arith.addi %7, %4 : vector<8x1024xi32>
    %c1024_i32 = arith.constant 1024 : i32
    %9 = vector.broadcast %c1024_i32 : i32 to vector<8x1024xi32>
    %10 = arith.muli %8, %9 : vector<8x1024xi32>
    %11 = arith.addi %10, %5 : vector<8x1024xi32>
    %c0_2 = arith.constant 0 : index
    %12 = memref.load %arg1[%c0_2] : memref<1xi32, #tpu.memory_space<smem>>
    %13 = vector.broadcast %12 : i32 to vector<8x1024xi32>
    %14 = arith.xori %11, %13 : vector<8x1024xi32>
    %c16_i32 = arith.constant 16 : i32
    %15 = vector.broadcast %c16_i32 : i32 to vector<8x1024xi32>
    %16 = arith.shrui %14, %15 : vector<8x1024xi32>
    %17 = arith.xori %14, %16 : vector<8x1024xi32>
    %c-2048144789_i32 = arith.constant -2048144789 : i32
    %18 = vector.broadcast %c-2048144789_i32 : i32 to vector<8x1024xi32>
    %19 = arith.muli %17, %18 : vector<8x1024xi32>
    %c13_i32 = arith.constant 13 : i32
    %20 = vector.broadcast %c13_i32 : i32 to vector<8x1024xi32>
    %21 = arith.shrui %19, %20 : vector<8x1024xi32>
    %22 = arith.xori %19, %21 : vector<8x1024xi32>
    %c-1028477387_i32 = arith.constant -1028477387 : i32
    %23 = vector.broadcast %c-1028477387_i32 : i32 to vector<8x1024xi32>
    %24 = arith.muli %22, %23 : vector<8x1024xi32>
    %c16_i32_3 = arith.constant 16 : i32
    %25 = vector.broadcast %c16_i32_3 : i32 to vector<8x1024xi32>
    %26 = arith.shrui %24, %25 : vector<8x1024xi32>
    %27 = arith.xori %24, %26 : vector<8x1024xi32>
    %c8_i32_4 = arith.constant 8 : i32
    %28 = vector.broadcast %c8_i32_4 : i32 to vector<8x1024xi32>
    %29 = arith.shrui %27, %28 : vector<8x1024xi32>
    %30 = arith.sitofp %29 : vector<8x1024xi32> to vector<8x1024xf32>
    %cst = arith.constant 1.1920929E-7 : f32
    %31 = vector.broadcast %cst : f32 to vector<8x1024xf32>
    %32 = arith.mulf %30, %31 : vector<8x1024xf32>
    %cst_5 = arith.constant 1.000000e+00 : f32
    %33 = vector.broadcast %cst_5 : f32 to vector<8x1024xf32>
    %34 = arith.subf %32, %33 : vector<8x1024xf32>
    %35 = arith.cmpf olt, %34, %3 : vector<8x1024xf32>
    %36 = arith.extui %35 : vector<8x1024xi1> to vector<8x1024xi32>
    %37 = arith.sitofp %36 : vector<8x1024xi32> to vector<8x1024xf32>
    %c0_6 = arith.constant 0 : index
    %c0_7 = arith.constant 0 : index
    %38 = vector.load %arg4[%c0_6, %c0_7] : memref<8x1024xf32, #tpu.memory_space<vmem>>, vector<8x1024xf32>
    tpu.vector_store %arg4[%c0_6, %c0_7], %37 {strides = array<i32>} : memref<8x1024xf32, #tpu.memory_space<vmem>>, vector<8x1024xf32>,
    return
  }
  func.func @transform_0(%arg0: i32) -> i32 {
    %c0_i32 = arith.constant 0 : i32
    %c0_i32_0 = arith.constant 0 : i32
    return %c0_i32 : i32
  }
  func.func @transform_1(%arg0: i32) -> i32 {
    %c0_i32 = arith.constant 0 : i32
    %c0_i32_0 = arith.constant 0 : i32
    return %c0_i32 : i32
  }
  func.func @transform_2(%arg0: i32) -> (i32, i32) {
    %c0_i32 = arith.constant 0 : i32
    %c0_i32_0 = arith.constant 0 : i32
    return %arg0, %c0_i32 : i32, i32
  }
  func.func @transform_3(%arg0: i32) -> (i32, i32) {
    %c0_i32 = arith.constant 0 : i32
    %c0_i32_0 = arith.constant 0 : i32
    return %arg0, %c0_i32 : i32, i32
  }
}

</mosaic_0001>

<llo_original>
// kernel: tpu_custom_call.1
$region0: #{tpu_custom_call.1}
  #allocation0 [shape = 'u32[]', space=smem, size = 0x4, offset = 0x4, fixed_abs, tag = 'smem constant byte address 0x4 - core index']
  #allocation1 [shape = 'u32[144,128]{1,0:T(1,128)}', space=vmem, size = 0x12000, scoped, tag = 'internal scratch']
  #allocation2 [shape = 's32[1]{0:T(128)S(6)}', space=smem, size = 0x200, scoped, tag = 'scoped memory for tpu_custom_call.1']
  #allocation3 [shape = 'f32[1]{0:T(128)S(6)}', space=smem, size = 0x200, scoped, tag = 'scoped memory for tpu_custom_call.1']
  %s0 = inlined_call_operand.<no memory space> [shape: s32[1], index: 0, kind: input, shape index: {}]
  %s1 = inlined_call_operand.<no memory space> [shape: f32[1], index: 1, kind: input, shape index: {}]
  %s2 = inlined_call_operand.hbm [shape: f32[8,1024], index: 2, kind: input, shape index: {}]
  %s3 = inlined_call_operand.hbm [shape: f32[8,1024], index: 3, kind: output, shape index: {}]
  %s4 = sld [smem:[#allocation0]]
  $region26: #{tpu_custom_call.1} parent=0
    _
  %s6 = ssub.s32 1, %s4
  %s7 = scalar_select 0, %s6, %s4
  %8 = sst [smem:[#allocation2]] %s0
  %9 = sst [smem:[#allocation3]] %s1
  $region1: #{tpu_custom_call.1} parent=0
    #allocation4 [shape = 'u8[32768]{0}', space=vmem, size = 0x8000, scoped, tag = 'input window, operand 2, single buffered']
    #allocation5 [shape = 's32[1]{0}', space=sflag, size = 0x4, scoped, tag = 'scoped memory for tpu_custom_call.1']
    #allocation6 [shape = 's32[1]{0}', space=sflag, size = 0x4, scoped, tag = 'scoped memory for tpu_custom_call.1']
    #allocation7 [shape = 'u8[32768]{0}', space=vmem, size = 0x8000, scoped, tag = 'output window, operand 0, single buffered']
    %10 = vsyncpa [#allocation5], 0
    %11 = vsyncpa [#allocation6], 0
    // Predicated region
    $region2: #{tpu_custom_call.1} parent=1 // pred_check
      _
    $region3: #{tpu_custom_call.1} parent=1 // pred_check_branch
      %13 = sbr.rel (0) target = $region5
    $region4: #{tpu_custom_call.1} parent=1 // pred_region
      _
    $region5: #{tpu_custom_call.1} parent=1 // pred_fallthru
      _
    // Predicated region
    $region6: #{tpu_custom_call.1} parent=1 // pred_check
      _
    $region7: #{tpu_custom_call.1} parent=1 // pred_check_branch
      %15 = sbr.rel (0) target = $region9
    $region8: #{tpu_custom_call.1} parent=1 // pred_region
      _
    $region9: #{tpu_custom_call.1} parent=1 // pred_fallthru
      _
    // Predicated region
    $region10: #{tpu_custom_call.1} parent=1 // pred_check
      _
    $region11: #{tpu_custom_call.1} parent=1 // pred_check_branch
      %17 = sbr.rel (0) target = $region13
    $region12: #{tpu_custom_call.1} parent=1 // pred_region
      %s19 = ssub.s32 1024, 1024
      %20 = vsyncadd [#allocation5], %s19
      %s22 = sshll.u32 [#allocation4], 4
      %s23 = int_to_ptr.vmem [resolvable:$true] %s22
      %25 = dma.hbm_to_vmem [thread:$0]  %s2, 1024, %s23, [#allocation5]
    $region13: #{tpu_custom_call.1} parent=1 // pred_fallthru
      _
    // Predicated region
    $region14: #{tpu_custom_call.1} parent=1 // pred_check
      _
    $region15: #{tpu_custom_call.1} parent=1 // pred_check_branch
      %27 = sbr.rel (0) target = $region17
    $region16: #{tpu_custom_call.1} parent=1 // pred_region
      %28 = dma.done [#allocation5], 1024
    $region17: #{tpu_custom_call.1} parent=1 // pred_fallthru
      _
    %s29 = sld [smem:[#allocation3]]
    %v30 = vld [vmem:[#allocation4] sm:$0xff]
    %v31 = vld [vmem:[#allocation4 + $0x8] sm:$0xff]
    %v32 = vld [vmem:[#allocation4 + $0x10] sm:$0xff]
    %v33 = vld [vmem:[#allocation4 + $0x18] sm:$0xff]
    %v34 = vld [vmem:[#allocation4 + $0x20] sm:$0xff]
    %v35 = vld [vmem:[#allocation4 + $0x28] sm:$0xff]
    %v36 = vld [vmem:[#allocation4 + $0x30] sm:$0xff]
    %v37 = vld [vmem:[#allocation4 + $0x38] sm:$0xff]
    %v38 = vstv %s29
    %v39 = vmul.f32 %v38, %v30
    %v40 = vmul.f32 %v38, %v31
    %v41 = vmul.f32 %v38, %v32
    %v42 = vmul.f32 %v38, %v33
    %v43 = vmul.f32 %v38, %v34
    %v44 = vmul.f32 %v38, %v35
    %v45 = vmul.f32 %v38, %v36
    %v46 = vmul.f32 %v38, %v37
    %v47 = vlaneseq
    %v48 = vshrl.u32 %v47, 7
    %v49 = vlaneseq
    %v50 = vand.u32 %v49, 127
    %v51 = vadd.s32 %v50, 128
    %v52 = vadd.s32 %v50, 256
    %v53 = vadd.s32 %v50, 384
    %v54 = vadd.s32 %v50, 512
    %v55 = vadd.s32 %v50, 640
    %v56 = vadd.s32 %v50, 768
    %v57 = vadd.s32 %v50, 896
    %s58 = smul.u32 0, 8
    %v59 = vstv %s58
    %v60 = vadd.s32 %v59, %v48
    %v61 = vmul.u32 %v60, 1024
    %v62 = vadd.s32 %v61, %v50
    %v63 = vadd.s32 %v61, %v51
    %v64 = vadd.s32 %v61, %v52
    %v65 = vadd.s32 %v61, %v53
    %v66 = vadd.s32 %v61, %v54
    %v67 = vadd.s32 %v61, %v55
    %v68 = vadd.s32 %v61, %v56
    %v69 = vadd.s32 %v61, %v57
    %s70 = sld [smem:[#allocation2]]
    %v71 = vstv %s70
    %v72 = vxor.u32 %v62, %v71
    %v73 = vxor.u32 %v63, %v71
    %v74 = vxor.u32 %v64, %v71
    %v75 = vxor.u32 %v65, %v71
    %v76 = vxor.u32 %v66, %v71
    %v77 = vxor.u32 %v67, %v71
    %v78 = vxor.u32 %v68, %v71
    %v79 = vxor.u32 %v69, %v71
    %v80 = vshrl.u32 %v72, 16
    %v81 = vshrl.u32 %v73, 16
    %v82 = vshrl.u32 %v74, 16
    %v83 = vshrl.u32 %v75, 16
    %v84 = vshrl.u32 %v76, 16
    %v85 = vshrl.u32 %v77, 16
    %v86 = vshrl.u32 %v78, 16
    %v87 = vshrl.u32 %v79, 16
    %v88 = vxor.u32 %v72, %v80
    %v89 = vxor.u32 %v73, %v81
    %v90 = vxor.u32 %v74, %v82
    %v91 = vxor.u32 %v75, %v83
    %v92 = vxor.u32 %v76, %v84
    %v93 = vxor.u32 %v77, %v85
    %v94 = vxor.u32 %v78, %v86
    %v95 = vxor.u32 %v79, %v87
    %v96 = vmul.u32 %v88, 2246822507
    %v97 = vmul.u32 %v89, 2246822507
    %v98 = vmul.u32 %v90, 2246822507
    %v99 = vmul.u32 %v91, 2246822507
    %v100 = vmul.u32 %v92, 2246822507
    %v101 = vmul.u32 %v93, 2246822507
    %v102 = vmul.u32 %v94, 2246822507
    %v103 = vmul.u32 %v95, 2246822507
    %v104 = vshrl.u32 %v96, 13
    %v105 = vshrl.u32 %v97, 13
    %v106 = vshrl.u32 %v98, 13
    %v107 = vshrl.u32 %v99, 13
    %v108 = vshrl.u32 %v100, 13
    %v109 = vshrl.u32 %v101, 13
    %v110 = vshrl.u32 %v102, 13
    %v111 = vshrl.u32 %v103, 13
    %v112 = vxor.u32 %v96, %v104
    %v113 = vxor.u32 %v97, %v105
    %v114 = vxor.u32 %v98, %v106
    %v115 = vxor.u32 %v99, %v107
    %v116 = vxor.u32 %v100, %v108
    %v117 = vxor.u32 %v101, %v109
    %v118 = vxor.u32 %v102, %v110
    %v119 = vxor.u32 %v103, %v111
    %v120 = vmul.u32 %v112, 3266489909
    %v121 = vmul.u32 %v113, 3266489909
    %v122 = vmul.u32 %v114, 3266489909
    %v123 = vmul.u32 %v115, 3266489909
    %v124 = vmul.u32 %v116, 3266489909
    %v125 = vmul.u32 %v117, 3266489909
    %v126 = vmul.u32 %v118, 3266489909
    %v127 = vmul.u32 %v119, 3266489909
    %v128 = vshrl.u32 %v120, 16
    %v129 = vshrl.u32 %v121, 16
    %v130 = vshrl.u32 %v122, 16
    %v131 = vshrl.u32 %v123, 16
    %v132 = vshrl.u32 %v124, 16
    %v133 = vshrl.u32 %v125, 16
    %v134 = vshrl.u32 %v126, 16
    %v135 = vshrl.u32 %v127, 16
    %v136 = vxor.u32 %v120, %v128
    %v137 = vxor.u32 %v121, %v129
    %v138 = vxor.u32 %v122, %v130
    %v139 = vxor.u32 %v123, %v131
    %v140 = vxor.u32 %v124, %v132
    %v141 = vxor.u32 %v125, %v133
    %v142 = vxor.u32 %v126, %v134
    %v143 = vxor.u32 %v127, %v135
    %v144 = vshrl.u32 %v136, 8
    %v145 = vshrl.u32 %v137, 8
    %v146 = vshrl.u32 %v138, 8
    %v147 = vshrl.u32 %v139, 8
    %v148 = vshrl.u32 %v140, 8
    %v149 = vshrl.u32 %v141, 8
    %v150 = vshrl.u32 %v142, 8
    %v151 = vshrl.u32 %v143, 8
    %v152 = vcvt.s32.f32 %v144
    %v153 = vcvt.s32.f32 %v145
    %v154 = vcvt.s32.f32 %v146
    %v155 = vcvt.s32.f32 %v147
    %v156 = vcvt.s32.f32 %v148
    %v157 = vcvt.s32.f32 %v149
    %v158 = vcvt.s32.f32 %v150
    %v159 = vcvt.s32.f32 %v151
    %v160 = vmul.f32 %v152, 1.1920929e-07
    %v161 = vmul.f32 %v153, 1.1920929e-07
    %v162 = vmul.f32 %v154, 1.1920929e-07
    %v163 = vmul.f32 %v155, 1.1920929e-07
    %v164 = vmul.f32 %v156, 1.1920929e-07
    %v165 = vmul.f32 %v157, 1.1920929e-07
    %v166 = vmul.f32 %v158, 1.1920929e-07
    %v167 = vmul.f32 %v159, 1.1920929e-07
    %v168 = vsub.f32 %v160, 1.0
    %v169 = vsub.f32 %v161, 1.0
    %v170 = vsub.f32 %v162, 1.0
    %v171 = vsub.f32 %v163, 1.0
    %v172 = vsub.f32 %v164, 1.0
    %v173 = vsub.f32 %v165, 1.0
    %v174 = vsub.f32 %v166, 1.0
    %v175 = vsub.f32 %v167, 1.0
    %vm176 = vcmp.lt.f32.partialorder %v168, %v39
    %vm177 = vcmp.lt.f32.partialorder %v169, %v40
    %vm178 = vcmp.lt.f32.partialorder %v170, %v41
    %vm179 = vcmp.lt.f32.partialorder %v171, %v42
    %vm180 = vcmp.lt.f32.partialorder %v172, %v43
    %vm181 = vcmp.lt.f32.partialorder %v173, %v44
    %vm182 = vcmp.lt.f32.partialorder %v174, %v45
    %vm183 = vcmp.lt.f32.partialorder %v175, %v46
    %v184 = vsel %vm176, 1, 0
    %v185 = vsel %vm177, 1, 0
    %v186 = vsel %vm178, 1, 0
    %v187 = vsel %vm179, 1, 0
    %v188 = vsel %vm180, 1, 0
    %v189 = vsel %vm181, 1, 0
    %v190 = vsel %vm182, 1, 0
    %v191 = vsel %vm183, 1, 0
    %v192 = vcvt.s32.f32 %v184
    %v193 = vcvt.s32.f32 %v185
    %v194 = vcvt.s32.f32 %v186
    %v195 = vcvt.s32.f32 %v187
    %v196 = vcvt.s32.f32 %v188
    %v197 = vcvt.s32.f32 %v189
    %v198 = vcvt.s32.f32 %v190
    %v199 = vcvt.s32.f32 %v191
    %200 = vst [vmem:[#allocation7] sm:$0xff] %v192
    %201 = vst [vmem:[#allocation7 + $0x8] sm:$0xff] %v193
    %202 = vst [vmem:[#allocation7 + $0x10] sm:$0xff] %v194
    %203 = vst [vmem:[#allocation7 + $0x18] sm:$0xff] %v195
    %204 = vst [vmem:[#allocation7 + $0x20] sm:$0xff] %v196
    %205 = vst [vmem:[#allocation7 + $0x28] sm:$0xff] %v197
    %206 = vst [vmem:[#allocation7 + $0x30] sm:$0xff] %v198
    %207 = vst [vmem:[#allocation7 + $0x38] sm:$0xff] %v199
    // Predicated region
    $region18: #{tpu_custom_call.1} parent=1 // pred_check
      _
    $region19: #{tpu_custom_call.1} parent=1 // pred_check_branch
      %209 = sbr.rel (0) target = $region21
    $region20: #{tpu_custom_call.1} parent=1 // pred_region
      %s211 = ssub.s32 1024, 1024
      %212 = vsyncadd [#allocation6], %s211
      %s214 = sshll.u32 [#allocation7], 4
      %s215 = int_to_ptr.vmem [resolvable:$true] %s214
      %217 = dma.vmem_to_hbm [thread:$0]  %s215, 1024, %s3, [#allocation6]
    $region21: #{tpu_custom_call.1} parent=1 // pred_fallthru
      _
    // Predicated region
    $region22: #{tpu_custom_call.1} parent=1 // pred_check
      _
    $region23: #{tpu_custom_call.1} parent=1 // pred_check_branch
      %219 = sbr.rel (0) target = $region25
    $region24: #{tpu_custom_call.1} parent=1 // pred_region
      %220 = dma.done [#allocation6], 1024
    $region25: #{tpu_custom_call.1} parent=1 // pred_fallthru
      _
    %221 = vsyncpa [#allocation5], 1
    %222 = vsyncpa [#allocation6], 1

</llo_original>
